<compile_context>
chip_gen: v6e
topology: v6e:2x2x1
jax: 0.10.0
libtpu: 0.0.40
codegen_flags: <defaults>
</compile_context>

<pallas_src>
import jax
import jax.numpy as jnp
from jax.experimental import pallas as pl
from jax.experimental.pallas import tpu as pltpu

LN_EPS = 1e-5                    # nn.LayerNorm default
WEIGHT_FINAL_LAYER = 0.003
BIAS_FINAL_LAYER = 0.0003


def _round_up(x, m):
    return (x + m - 1) // m * m


def _layernorm_feat0(x, gamma, beta):
    # LayerNorm over features = axis 0 (sublanes) in the batch-in-lanes layout.
    # Two-pass statistics, matching torch.nn.LayerNorm numerics.
    mu = jnp.mean(x, axis=0, keepdims=True)
    xc = x - mu
    var = jnp.mean(xc * xc, axis=0, keepdims=True)
    return xc * jax.lax.rsqrt(var + LN_EPS) * gamma + beta


def _critic_kernel(x_ref, w1x_ref, ln1_ref, w2h_ref, w2x_ref, ln2q_ref, bq_ref,
                   out_ref):
    # x_ref: (R, blk) fused [state | actions | zero-pad], batch on lanes.
    x = x_ref[...]

    # --- fc1 -> +b1 -> LayerNorm -> relu ------------------------------------
    # (action / pad columns of w1x are zero, so this is exactly fc1(state))
    h1 = jnp.dot(w1x_ref[...], x, preferred_element_type=jnp.float32)
    h1 = h1 + ln1_ref[:, 0:1]                                   # b1 (h0, 1)
    h1 = _layernorm_feat0(h1, ln1_ref[:, 1:2], ln1_ref[:, 2:3])  # gamma1, beta1
    h1 = jnp.maximum(h1, 0.0)

    # --- fc2 over cat([h1, actions]) -----------------------------------------
    # fc2(cat) == W2h @ h1 + W2x @ x  (state/pad rows of W2x are zero).
    # Both parts on the MXU (idle otherwise) — no operand slicing.
    h2 = jnp.dot(w2h_ref[...], h1, preferred_element_type=jnp.float32)
    h2 = h2 + jnp.dot(w2x_ref[...], x, preferred_element_type=jnp.float32)
    h2 = h2 + ln2q_ref[:, 0:1]                                   # b2 (h1, 1)
    h2 = _layernorm_feat0(h2, ln2q_ref[:, 1:2], ln2q_ref[:, 2:3])
    h2 = jnp.maximum(h2, 0.0)

    # --- Q head (out_features = 1): VPU multiply + sublane (XLU) reduce ------
    # Produces a lane-dense (1, blk) row — dense vst, contiguous HBM writeback.
    q = jnp.sum(h2 * ln2q_ref[:, 3:4], axis=0, keepdims=True) + bq_ref[0, 0]
    out_ref[...] = q.astype(out_ref.dtype)


def critic_forward(state, actions, params, block_cols=1024):
    """state: (B, input_shape + goal_shape), actions: (B, num_actions) -> (B, 1)."""
    B, d_in = state.shape
    A = actions.shape[1]
    R = params["w1x"].shape[1]
    assert R == _round_up(d_in + A, 8), "params/input feature sizes disagree"

    # Fused, feature-major ("batch-in-lanes") input: (R, B)
    #   rows [0, d_in)        = state features
    #   rows [d_in, d_in + A) = action features
    #   rows [d_in + A, R)    = zero padding (sublane alignment)
    x = jnp.concatenate(
        [state, actions, jnp.zeros((B, R - d_in - A), state.dtype)], axis=1).T

    # Lane-block selection: balanced multiple-of-128 blocks (minimal padding),
    # >= 2 grid steps when the batch is big enough so both v7x TCs get work.
    nb = pl.cdiv(B, block_cols)
    if B >= 256:
        nb = max(nb, 2)
    blk = _round_up(pl.cdiv(B, nb), 128)
    B_pad = nb * blk
    if B_pad != B:
        x = jnp.pad(x, ((0, 0), (0, B_pad - B)))

    def resident(arr):
        # Full-extent block, constant index -> DMA'd once, stays VMEM-resident.
        return pl.BlockSpec(arr.shape, lambda i: (0, 0))

    out = pl.pallas_call(
        _critic_kernel,
        out_shape=jax.ShapeDtypeStruct((1, B_pad), jnp.float32),
        grid=(nb,),
        in_specs=[
            pl.BlockSpec((R, blk), lambda i: (0, i)),   # fused state||actions
            resident(params["w1x"]),                    # (h0, R)
            resident(params["ln1"]),                    # (h0, 3)  [b1|g1|be1]
            resident(params["w2h"]),                    # (h1, h0)
            resident(params["w2x"]),                    # (h1, R)
            resident(params["ln2q"]),                   # (h1, 4)  [b2|g2|be2|wq]
            pl.BlockSpec((1, 1), lambda i: (0, 0),
                         memory_space=pltpu.MemorySpace.SMEM),   # bq scalar
        ],
        out_specs=pl.BlockSpec((1, blk), lambda i: (0, i)),      # lane-dense q
        compiler_params=pltpu.CompilerParams(
            dimension_semantics=("parallel",)),
    )(x, params["w1x"], params["ln1"], params["w2h"], params["w2x"],
      params["ln2q"], params["bq"])
    return out[0, :B].reshape(B, 1)


def init_params(key, input_shape, goal_shape, hidden_shape, num_actions):
    """Deterministic init mirroring Critic.init_weight_bias, pre-packed for
    the batch-in-lanes kernel layout."""
    h0, h1 = hidden_shape
    d_in = input_shape + goal_shape
    R = _round_up(d_in + num_actions, 8)

    k = jax.random.split(key, 6)
    r1 = 1.0 / jnp.sqrt(h0)     # fc1: 1/sqrt(weight.size()[0]) = 1/sqrt(h0)
    r2 = 1.0 / jnp.sqrt(h1)     # fc2: 1/sqrt(h1)

    # PyTorch nn.Linear weight layout: (out_features, in_features).
    w1 = jax.random.uniform(k[0], (h0, d_in), jnp.float32, -r1, r1)
    b1 = jax.random.uniform(k[1], (h0,), jnp.float32, -r1, r1)
    w2 = jax.random.uniform(k[2], (h1, h0 + num_actions), jnp.float32, -r2, r2)
    b2 = jax.random.uniform(k[3], (h1,), jnp.float32, -r2, r2)
    wq = jax.random.uniform(k[4], (h1,), jnp.float32,
                            -WEIGHT_FINAL_LAYER, WEIGHT_FINAL_LAYER)
    bq = jax.random.uniform(k[5], (1, 1), jnp.float32,
                            -BIAS_FINAL_LAYER, BIAS_FINAL_LAYER)

    # w1x: fc1 weight spread onto the fused input rows (action/pad cols = 0).
    w1x = jnp.zeros((h0, R), jnp.float32).at[:, :d_in].set(w1)
    # w2h: fc2 slice acting on h1; w2x: fc2 slice acting on actions, spread
    # onto the fused input rows (state/pad cols = 0) -> concat folds into
    # two full-operand MXU dots.
    w2h = w2[:, :h0]
    w2x = jnp.zeros((h1, R), jnp.float32).at[:, d_in:d_in + num_actions].set(
        w2[:, h0:])

    # Per-feature vectors packed as columns for lane-broadcast in-kernel.
    ln1 = jnp.stack([b1, jnp.ones((h0,), jnp.float32),
                     jnp.zeros((h0,), jnp.float32)], axis=1)          # (h0, 3)
    ln2q = jnp.stack([b2, jnp.ones((h1,), jnp.float32),
                      jnp.zeros((h1,), jnp.float32), wq], axis=1)     # (h1, 4)

    return dict(w1x=w1x, ln1=ln1, w2h=w2h, w2x=w2x, ln2q=ln2q, bq=bq)


def reference_forward(state, actions, p):
    """Pure-JAX reference (matches torch forward with two-pass LayerNorm)."""
    B, d_in = state.shape
    A = actions.shape[1]

    def ln(x, g, b):
        mu = jnp.mean(x, -1, keepdims=True)
        var = jnp.mean((x - mu) ** 2, -1, keepdims=True)
        return (x - mu) / jnp.sqrt(var + LN_EPS) * g + b

    w1 = p["w1x"][:, :d_in]
    w2 = jnp.concatenate([p["w2h"], p["w2x"][:, d_in:d_in + A]], axis=1)
    b1, g1, be1 = p["ln1"][:, 0], p["ln1"][:, 1], p["ln1"][:, 2]
    b2, g2, be2, wq = (p["ln2q"][:, 0], p["ln2q"][:, 1],
                       p["ln2q"][:, 2], p["ln2q"][:, 3])

    h1 = jax.nn.relu(ln(state @ w1.T + b1, g1, be1))
    cat = jnp.concatenate([h1, actions], axis=1)
    h2 = jax.nn.relu(ln(cat @ w2.T + b2, g2, be2))
    return h2 @ wq[:, None] + p["bq"]


# TODO(synk): optimizer (Adam), save_model/load_model and makedirs are host-side
# training/IO utilities, not part of the forward pass — not implemented here.

if __name__ == "__main__":
    INPUT_SHAPE = 13
    GOAL_SHAPE = 3            # is_her=True
    HIDDEN_SHAPE = (32, 32)
    NUM_ACTIONS = 4
    BATCH = 8

    key = jax.random.PRNGKey(0)
    kp, ks, ka, ks2, ka2 = jax.random.split(key, 5)

    params = init_params(kp, INPUT_SHAPE, GOAL_SHAPE, HIDDEN_SHAPE, NUM_ACTIONS)
    d_in = INPUT_SHAPE + GOAL_SHAPE

    # Small-batch check (single grid step).
    state = jax.random.normal(ks, (BATCH, d_in), jnp.float32)
    actions = jax.random.normal(ka, (BATCH, NUM_ACTIONS), jnp.float32)
    out = jax.block_until_ready(critic_forward(state, actions, params))
    ref = reference_forward(state, actions, params)
    assert out.shape == (BATCH, 1)
    assert jnp.allclose(out, ref, atol=1e-4, rtol=1e-4), (out, ref)

    # Larger batch: multi-block grid (>= 2 steps -> both v7x TCs), padding path.
    B2 = 600
    state2 = jax.random.normal(ks2, (B2, d_in), jnp.float32)
    actions2 = jax.random.normal(ka2, (B2, NUM_ACTIONS), jnp.float32)
    out2 = jax.block_until_ready(critic_forward(state2, actions2, params))
    ref2 = reference_forward(state2, actions2, params)
    assert out2.shape == (B2, 1)
    assert jnp.allclose(out2, ref2, atol=1e-4, rtol=1e-4)

    print("KERNEL_OK")
</pallas_src>

<mosaic_0001>
module attributes {stable_mosaic.version = 11 : i64} {
  func.func @_critic_kernel(%arg0: i32, %arg1: memref<24x128xf32, #tpu.memory_space<vmem>>, %arg2: memref<32x24xf32, #tpu.memory_space<vmem>>, %arg3: memref<32x3xf32, #tpu.memory_space<vmem>>, %arg4: memref<32x32xf32, #tpu.memory_space<vmem>>, %arg5: memref<32x24xf32, #tpu.memory_space<vmem>>, %arg6: memref<32x4xf32, #tpu.memory_space<vmem>>, %arg7: memref<1x1xf32, #tpu.memory_space<smem>>, %arg8: memref<1x128xf32, #tpu.memory_space<vmem>>) attributes {dimension_semantics = [#tpu.dimension_semantics<parallel>], iteration_bounds = array<i64: 1>, scalar_prefetch = 0 : i64, scratch_operands = 0 : i64, tpu.core_type = #tpu.core_type<tc>, window_params = [{transform_indices = @transform_0, window_bounds = array<i64: 24, 128>}, {pipeline_mode = #tpu.pipeline_mode<synchronous>, transform_indices = @transform_1, window_bounds = array<i64: 32, 24>}, {pipeline_mode = #tpu.pipeline_mode<synchronous>, transform_indices = @transform_2, window_bounds = array<i64: 32, 3>}, {pipeline_mode = #tpu.pipeline_mode<synchronous>, transform_indices = @transform_3, window_bounds = array<i64: 32, 32>}, {pipeline_mode = #tpu.pipeline_mode<synchronous>, transform_indices = @transform_4, window_bounds = array<i64: 32, 24>}, {pipeline_mode = #tpu.pipeline_mode<synchronous>, transform_indices = @transform_5, window_bounds = array<i64: 32, 4>}, {transform_indices = @transform_6, window_bounds = array<i64: 1, 1>}, {transform_indices = @transform_7, window_bounds = array<i64: 1, 128>}]} {
    %c0 = arith.constant 0 : index
    %c0_0 = arith.constant 0 : index
    %0 = vector.load %arg1[%c0, %c0_0] : memref<24x128xf32, #tpu.memory_space<vmem>>, vector<24x128xf32>
    %c0_1 = arith.constant 0 : index
    %c0_2 = arith.constant 0 : index
    %1 = vector.load %arg2[%c0_1, %c0_2] : memref<32x24xf32, #tpu.memory_space<vmem>>, vector<32x24xf32>
    %cst = arith.constant dense<0.000000e+00> : vector<32x128xf32>
    %2 = tpu.matmul %1, %0, %cst {dimension_numbers = #tpu.dot_dimension_numbers<[1], [0], [0], [1], [0, 0, 1, 1], [], []>} : vector<32x24xf32>, vector<24x128xf32>, vector<32x128xf32> -> vector<32x128xf32>
    %c0_3 = arith.constant 0 : index
    %c0_4 = arith.constant 0 : index
    %3 = vector.load %arg3[%c0_3, %c0_4] : memref<32x3xf32, #tpu.memory_space<vmem>>, vector<32x1xf32>
    %4 = vector.broadcast %3 : vector<32x1xf32> to vector<32x128xf32>
    %5 = arith.addf %2, %4 : vector<32x128xf32>
    %c0_5 = arith.constant 0 : index
    %c1 = arith.constant 1 : index
    %6 = vector.load %arg3[%c0_5, %c1] : memref<32x3xf32, #tpu.memory_space<vmem>>, vector<32x1xf32>
    %c0_6 = arith.constant 0 : index
    %c2 = arith.constant 2 : index
    %7 = vector.load %arg3[%c0_6, %c2] : memref<32x3xf32, #tpu.memory_space<vmem>>, vector<32x1xf32>
    %cst_7 = arith.constant dense<0.000000e+00> : vector<128xf32>
    %8 = vector.multi_reduction <add>, %5, %cst_7 [0] : vector<32x128xf32> to vector<128xf32>
    %9 = vector.shape_cast %8 : vector<128xf32> to vector<1x128xf32>
    %cst_8 = arith.constant 3.200000e+01 : f32
    %10 = vector.broadcast %cst_8 : f32 to vector<1x128xf32>
    %11 = arith.divf %9, %10 : vector<1x128xf32>
    %12 = vector.broadcast %11 : vector<1x128xf32> to vector<32x128xf32>
    %13 = arith.subf %5, %12 : vector<32x128xf32>
    %14 = arith.mulf %13, %13 : vector<32x128xf32>
    %cst_9 = arith.constant dense<0.000000e+00> : vector<128xf32>
    %15 = vector.multi_reduction <add>, %14, %cst_9 [0] : vector<32x128xf32> to vector<128xf32>
    %16 = vector.shape_cast %15 : vector<128xf32> to vector<1x128xf32>
    %cst_10 = arith.constant 3.200000e+01 : f32
    %17 = vector.broadcast %cst_10 : f32 to vector<1x128xf32>
    %18 = arith.divf %16, %17 : vector<1x128xf32>
    %cst_11 = arith.constant 9.99999974E-6 : f32
    %19 = vector.broadcast %cst_11 : f32 to vector<1x128xf32>
    %20 = arith.addf %18, %19 : vector<1x128xf32>
    %21 = math.rsqrt %20 : vector<1x128xf32>
    %22 = vector.broadcast %21 : vector<1x128xf32> to vector<32x128xf32>
    %23 = arith.mulf %13, %22 : vector<32x128xf32>
    %24 = vector.broadcast %6 : vector<32x1xf32> to vector<32x128xf32>
    %25 = arith.mulf %23, %24 : vector<32x128xf32>
    %26 = vector.broadcast %7 : vector<32x1xf32> to vector<32x128xf32>
    %27 = arith.addf %25, %26 : vector<32x128xf32>
    %cst_12 = arith.constant 0.000000e+00 : f32
    %28 = vector.broadcast %cst_12 : f32 to vector<32x128xf32>
    %29 = arith.maximumf %27, %28 : vector<32x128xf32>
    %c0_13 = arith.constant 0 : index
    %c0_14 = arith.constant 0 : index
    %30 = vector.load %arg4[%c0_13, %c0_14] : memref<32x32xf32, #tpu.memory_space<vmem>>, vector<32x32xf32>
    %cst_15 = arith.constant dense<0.000000e+00> : vector<32x128xf32>
    %31 = tpu.matmul %30, %29, %cst_15 {dimension_numbers = #tpu.dot_dimension_numbers<[1], [0], [0], [1], [0, 0, 1, 1], [], []>} : vector<32x32xf32>, vector<32x128xf32>, vector<32x128xf32> -> vector<32x128xf32>
    %c0_16 = arith.constant 0 : index
    %c0_17 = arith.constant 0 : index
    %32 = vector.load %arg5[%c0_16, %c0_17] : memref<32x24xf32, #tpu.memory_space<vmem>>, vector<32x24xf32>
    %cst_18 = arith.constant dense<0.000000e+00> : vector<32x128xf32>
    %33 = tpu.matmul %32, %0, %cst_18 {dimension_numbers = #tpu.dot_dimension_numbers<[1], [0], [0], [1], [0, 0, 1, 1], [], []>} : vector<32x24xf32>, vector<24x128xf32>, vector<32x128xf32> -> vector<32x128xf32>
    %34 = arith.addf %31, %33 : vector<32x128xf32>
    %c0_19 = arith.constant 0 : index
    %c0_20 = arith.constant 0 : index
    %35 = vector.load %arg6[%c0_19, %c0_20] : memref<32x4xf32, #tpu.memory_space<vmem>>, vector<32x1xf32>
    %36 = vector.broadcast %35 : vector<32x1xf32> to vector<32x128xf32>
    %37 = arith.addf %34, %36 : vector<32x128xf32>
    %c0_21 = arith.constant 0 : index
    %c1_22 = arith.constant 1 : index
    %38 = vector.load %arg6[%c0_21, %c1_22] : memref<32x4xf32, #tpu.memory_space<vmem>>, vector<32x1xf32>
    %c0_23 = arith.constant 0 : index
    %c2_24 = arith.constant 2 : index
    %39 = vector.load %arg6[%c0_23, %c2_24] : memref<32x4xf32, #tpu.memory_space<vmem>>, vector<32x1xf32>
    %cst_25 = arith.constant dense<0.000000e+00> : vector<128xf32>
    %40 = vector.multi_reduction <add>, %37, %cst_25 [0] : vector<32x128xf32> to vector<128xf32>
    %41 = vector.shape_cast %40 : vector<128xf32> to vector<1x128xf32>
    %cst_26 = arith.constant 3.200000e+01 : f32
    %42 = vector.broadcast %cst_26 : f32 to vector<1x128xf32>
    %43 = arith.divf %41, %42 : vector<1x128xf32>
    %44 = vector.broadcast %43 : vector<1x128xf32> to vector<32x128xf32>
    %45 = arith.subf %37, %44 : vector<32x128xf32>
    %46 = arith.mulf %45, %45 : vector<32x128xf32>
    %cst_27 = arith.constant dense<0.000000e+00> : vector<128xf32>
    %47 = vector.multi_reduction <add>, %46, %cst_27 [0] : vector<32x128xf32> to vector<128xf32>
    %48 = vector.shape_cast %47 : vector<128xf32> to vector<1x128xf32>
    %cst_28 = arith.constant 3.200000e+01 : f32
    %49 = vector.broadcast %cst_28 : f32 to vector<1x128xf32>
    %50 = arith.divf %48, %49 : vector<1x128xf32>
    %cst_29 = arith.constant 9.99999974E-6 : f32
    %51 = vector.broadcast %cst_29 : f32 to vector<1x128xf32>
    %52 = arith.addf %50, %51 : vector<1x128xf32>
    %53 = math.rsqrt %52 : vector<1x128xf32>
    %54 = vector.broadcast %53 : vector<1x128xf32> to vector<32x128xf32>
    %55 = arith.mulf %45, %54 : vector<32x128xf32>
    %56 = vector.broadcast %38 : vector<32x1xf32> to vector<32x128xf32>
    %57 = arith.mulf %55, %56 : vector<32x128xf32>
    %58 = vector.broadcast %39 : vector<32x1xf32> to vector<32x128xf32>
    %59 = arith.addf %57, %58 : vector<32x128xf32>
    %cst_30 = arith.constant 0.000000e+00 : f32
    %60 = vector.broadcast %cst_30 : f32 to vector<32x128xf32>
    %61 = arith.maximumf %59, %60 : vector<32x128xf32>
    %c0_31 = arith.constant 0 : index
    %c3 = arith.constant 3 : index
    %62 = vector.load %arg6[%c0_31, %c3] : memref<32x4xf32, #tpu.memory_space<vmem>>, vector<32x1xf32>
    %63 = vector.broadcast %62 : vector<32x1xf32> to vector<32x128xf32>
    %64 = arith.mulf %61, %63 : vector<32x128xf32>
    %cst_32 = arith.constant dense<0.000000e+00> : vector<128xf32>
    %65 = vector.multi_reduction <add>, %64, %cst_32 [0] : vector<32x128xf32> to vector<128xf32>
    %66 = vector.shape_cast %65 : vector<128xf32> to vector<1x128xf32>
    %c0_33 = arith.constant 0 : index
    %c0_34 = arith.constant 0 : index
    %67 = memref.load %arg7[%c0_33, %c0_34] : memref<1x1xf32, #tpu.memory_space<smem>>
    %68 = vector.broadcast %67 : f32 to vector<1x128xf32>
    %69 = arith.addf %66, %68 : vector<1x128xf32>
    %c0_35 = arith.constant 0 : index
    %c0_36 = arith.constant 0 : index
    %70 = vector.load %arg8[%c0_35, %c0_36] : memref<1x128xf32, #tpu.memory_space<vmem>>, vector<1x128xf32>
    tpu.vector_store %arg8[%c0_35, %c0_36], %69 {strides = array<i32>} : memref<1x128xf32, #tpu.memory_space<vmem>>, vector<1x128xf32>,
    return
  }
  func.func @transform_0(%arg0: i32) -> (i32, i32) {
    %c0_i32 = arith.constant 0 : i32
    %c0_i32_0 = arith.constant 0 : i32
    return %c0_i32, %arg0 : i32, i32
  }
  func.func @transform_1(%arg0: i32) -> (i32, i32) {
    %c0_i32 = arith.constant 0 : i32
    %c0_i32_0 = arith.constant 0 : i32
    %c0_i32_1 = arith.constant 0 : i32
    return %c0_i32, %c0_i32_0 : i32, i32
  }
  func.func @transform_2(%arg0: i32) -> (i32, i32) {
    %c0_i32 = arith.constant 0 : i32
    %c0_i32_0 = arith.constant 0 : i32
    %c0_i32_1 = arith.constant 0 : i32
    return %c0_i32, %c0_i32_0 : i32, i32
  }
  func.func @transform_3(%arg0: i32) -> (i32, i32) {
    %c0_i32 = arith.constant 0 : i32
    %c0_i32_0 = arith.constant 0 : i32
    %c0_i32_1 = arith.constant 0 : i32
    return %c0_i32, %c0_i32_0 : i32, i32
  }
  func.func @transform_4(%arg0: i32) -> (i32, i32) {
    %c0_i32 = arith.constant 0 : i32
    %c0_i32_0 = arith.constant 0 : i32
    %c0_i32_1 = arith.constant 0 : i32
    return %c0_i32, %c0_i32_0 : i32, i32
  }
  func.func @transform_5(%arg0: i32) -> (i32, i32) {
    %c0_i32 = arith.constant 0 : i32
    %c0_i32_0 = arith.constant 0 : i32
    %c0_i32_1 = arith.constant 0 : i32
    return %c0_i32, %c0_i32_0 : i32, i32
  }
  func.func @transform_6(%arg0: i32) -> (i32, i32) {
    %c0_i32 = arith.constant 0 : i32
    %c0_i32_0 = arith.constant 0 : i32
    %c0_i32_1 = arith.constant 0 : i32
    return %c0_i32, %c0_i32_0 : i32, i32
  }
  func.func @transform_7(%arg0: i32) -> (i32, i32) {
    %c0_i32 = arith.constant 0 : i32
    %c0_i32_0 = arith.constant 0 : i32
    return %c0_i32, %arg0 : i32, i32
  }
}

</mosaic_0001>

<llo_original>
// kernel: tpu_custom_call.1
$region0: #{tpu_custom_call.1}
  #allocation0 [shape = 'u32[]', space=smem, size = 0x4, offset = 0x4, fixed_abs, tag = 'smem constant byte address 0x4 - core index']
  #allocation1 [shape = 'u32[144,128]{1,0:T(1,128)}', space=vmem, size = 0x12000, scoped, tag = 'internal scratch']
  #allocation2 [shape = 'f32[1,1]{1,0:T(1,128)S(6)}', space=smem, size = 0x200, scoped, tag = 'scoped memory for tpu_custom_call.1']
  %s0 = inlined_call_operand.vmem [shape: f32[24,128], index: 0, kind: input, shape index: {}]
  %s1 = inlined_call_operand.vmem [shape: f32[32,24], index: 1, kind: input, shape index: {}]
  %s2 = inlined_call_operand.vmem [shape: f32[32,3], index: 2, kind: input, shape index: {}]
  %s3 = inlined_call_operand.vmem [shape: f32[32,32], index: 3, kind: input, shape index: {}]
  %s4 = inlined_call_operand.vmem [shape: f32[32,24], index: 4, kind: input, shape index: {}]
  %s5 = inlined_call_operand.vmem [shape: f32[32,4], index: 5, kind: input, shape index: {}]
  %s6 = inlined_call_operand.<no memory space> [shape: f32[1,1], index: 6, kind: input, shape index: {}]
  %s7 = inlined_call_operand.hbm [shape: f32[1,128], index: 7, kind: output, shape index: {}]
  %s8 = sld [smem:[#allocation0]]
  $region38: #{tpu_custom_call.1} parent=0
    _
  %s10 = ssub.s32 1, %s8
  %s11 = scalar_select 0, %s10, %s8
  %12 = sst [smem:[#allocation2]] %s6
  $region1: #{tpu_custom_call.1} parent=0
    #allocation3 [shape = 'u8[512]{0}', space=vmem, size = 0x400, scoped, tag = 'output window, operand 0, single buffered']
    #allocation4 [shape = 's32[1]{0}', space=sflag, size = 0x4, scoped, tag = 'scoped memory for tpu_custom_call.1']
    %13 = vsyncpa [#allocation4], 0
    // Predicated region
    $region2: #{tpu_custom_call.1} parent=1 // pred_check
      _
    $region3: #{tpu_custom_call.1} parent=1 // pred_check_branch
      %15 = sbr.rel (0) target = $region5
    $region4: #{tpu_custom_call.1} parent=1 // pred_region
      _
    $region5: #{tpu_custom_call.1} parent=1 // pred_fallthru
      _
    // Predicated region
    $region6: #{tpu_custom_call.1} parent=1 // pred_check
      _
    $region7: #{tpu_custom_call.1} parent=1 // pred_check_branch
      %17 = sbr.rel (0) target = $region9
    $region8: #{tpu_custom_call.1} parent=1 // pred_region
      _
    $region9: #{tpu_custom_call.1} parent=1 // pred_fallthru
      _
    // Predicated region
    $region10: #{tpu_custom_call.1} parent=1 // pred_check
      _
    $region11: #{tpu_custom_call.1} parent=1 // pred_check_branch
      %19 = sbr.rel (0) target = $region13
    $region12: #{tpu_custom_call.1} parent=1 // pred_region
      _
    $region13: #{tpu_custom_call.1} parent=1 // pred_fallthru
      _
    // Predicated region
    $region14: #{tpu_custom_call.1} parent=1 // pred_check
      _
    $region15: #{tpu_custom_call.1} parent=1 // pred_check_branch
      %21 = sbr.rel (0) target = $region17
    $region16: #{tpu_custom_call.1} parent=1 // pred_region
      _
    $region17: #{tpu_custom_call.1} parent=1 // pred_fallthru
      _
    // Predicated region
    $region18: #{tpu_custom_call.1} parent=1 // pred_check
      _
    $region19: #{tpu_custom_call.1} parent=1 // pred_check_branch
      %23 = sbr.rel (0) target = $region21
    $region20: #{tpu_custom_call.1} parent=1 // pred_region
      _
    $region21: #{tpu_custom_call.1} parent=1 // pred_fallthru
      _
    // Predicated region
    $region22: #{tpu_custom_call.1} parent=1 // pred_check
      _
    $region23: #{tpu_custom_call.1} parent=1 // pred_check_branch
      %25 = sbr.rel (0) target = $region25
    $region24: #{tpu_custom_call.1} parent=1 // pred_region
      _
    $region25: #{tpu_custom_call.1} parent=1 // pred_fallthru
      _
    // Predicated region
    $region26: #{tpu_custom_call.1} parent=1 // pred_check
      _
    $region27: #{tpu_custom_call.1} parent=1 // pred_check_branch
      %27 = sbr.rel (0) target = $region29
    $region28: #{tpu_custom_call.1} parent=1 // pred_region
      _
    $region29: #{tpu_custom_call.1} parent=1 // pred_fallthru
      _
    %v28 = vld [vmem:[%s0] sm:$0xff]
    %v29 = vld [vmem:[%s0 + $0x8] sm:$0xff]
    %v30 = vld [vmem:[%s0 + $0x10] sm:$0xff]
    %v31 = vld [vmem:[%s1] sm:$0xff]
    %v32 = vld [vmem:[%s1 + $0x8] sm:$0xff]
    %v33 = vld [vmem:[%s1 + $0x10] sm:$0xff]
    %v34 = vld [vmem:[%s1 + $0x18] sm:$0xff]
    %v35 = vld [vmem:[%s2] sm:$0xff]
    %v36 = vld [vmem:[%s2 + $0x8] sm:$0xff]
    %v37 = vld [vmem:[%s2 + $0x10] sm:$0xff]
    %v38 = vld [vmem:[%s2 + $0x18] sm:$0xff]
    %40 = vset.pattern.permute.xlu0 0
    %41 = vperm.xlu0 %40, %v35
    %v42 = vpop.permute.xlu0 %41
    %45 = vset.pattern.permute.xlu0 0
    %46 = vperm.xlu0 %45, %v36
    %v47 = vpop.permute.xlu0 %46
    %50 = vset.pattern.permute.xlu0 0
    %51 = vperm.xlu0 %50, %v37
    %v52 = vpop.permute.xlu0 %51
    %55 = vset.pattern.permute.xlu0 0
    %56 = vperm.xlu0 %55, %v38
    %v57 = vpop.permute.xlu0 %56
    %vm59 = vcmask 195584
    %v61 = vsel %vm59, %v31, 0
    %v64 = vsel %vm59, %v32, 0
    %v67 = vsel %vm59, %v33, 0
    %v70 = vsel %vm59, %v34, 0
    %72 = vmatprep.subr.mxu0 0.0
    %73 = vmatpush1.msra.mxu0 0.0
    %74 = vmatprep.subr.mxu0 0.0
    %75 = vmatpush1.msra.mxu0 0.0
    %76 = vmatprep.subr.mxu0 0.0
    %77 = vmatpush1.msra.mxu0 0.0
    %78 = vmatprep.subr.mxu0 0.0
    %79 = vmatpush1.msra.mxu0 0.0
    %80 = vmatprep.subr.mxu0 0.0
    %81 = vmatpush1.msra.mxu0 0.0
    %82 = vmatprep.subr.mxu0 0.0
    %83 = vmatpush1.msra.mxu0 0.0
    %84 = vmatprep.subr.mxu0 0.0
    %85 = vmatpush1.msra.mxu0 0.0
    %86 = vmatprep.subr.mxu0 0.0
    %87 = vmatpush1.msra.mxu0 0.0
    %88 = vmatprep.subr.mxu0 0.0
    %89 = vmatpush1.msra.mxu0 0.0
    %90 = vmatprep.subr.mxu0 0.0
    %91 = vmatpush1.msra.mxu0 0.0
    %92 = vmatprep.subr.mxu0 0.0
    %93 = vmatpush1.msra.mxu0 0.0
    %94 = vmatprep.subr.mxu0 0.0
    %95 = vmatpush1.msra.mxu0 0.0
    %96 = vmatprep.subr.mxu0 0.0
    %97 = vmatpush1.msra.mxu0 0.0
    %98 = vmatprep.subr.mxu0 0.0
    %99 = vmatpush1.msra.mxu0 %v30
    %100 = vmatprep.subr.mxu0 0.0
    %101 = vmatpush1.msra.mxu0 %v29
    %102 = vmatprep.subr.mxu0 0.0
    %103 = vmatpush1.msra.mxu0 %v28
    %104 = vmatprep.subr.mxu0 0.0
    %105 = vmatpush2.msra.mxu0 0.0
    %106 = vmatprep.subr.mxu0 0.0
    %107 = vmatpush2.msra.mxu0 0.0
    %108 = vmatprep.subr.mxu0 0.0
    %109 = vmatpush2.msra.mxu0 0.0
    %110 = vmatprep.subr.mxu0 0.0
    %111 = vmatpush2.msra.mxu0 0.0
    %112 = vmatprep.subr.mxu0 0.0
    %113 = vmatpush2.msra.mxu0 0.0
    %114 = vmatprep.subr.mxu0 0.0
    %115 = vmatpush2.msra.mxu0 0.0
    %116 = vmatprep.subr.mxu0 0.0
    %117 = vmatpush2.msra.mxu0 0.0
    %118 = vmatprep.subr.mxu0 0.0
    %119 = vmatpush2.msra.mxu0 0.0
    %120 = vmatprep.subr.mxu0 0.0
    %121 = vmatpush2.msra.mxu0 0.0
    %122 = vmatprep.subr.mxu0 0.0
    %123 = vmatpush2.msra.mxu0 0.0
    %124 = vmatprep.subr.mxu0 0.0
    %125 = vmatpush2.msra.mxu0 0.0
    %126 = vmatprep.subr.mxu0 0.0
    %127 = vmatpush2.msra.mxu0 0.0
    %128 = vmatprep.subr.mxu0 0.0
    %129 = vmatpush2.msra.mxu0 0.0
    %130 = vmatprep.subr.mxu0 0.0
    %131 = vmatpush2.msra.mxu0 0.0
    %132 = vmatprep.subr.mxu0 0.0
    %133 = vmatpush2.msra.mxu0 0.0
    %134 = vmatprep.subr.mxu0 0.0
    %135 = vmatpush2.msra.mxu0 0.0
    %136 = vmatprep.mubr.f32.mxu0 0.0
    %137 = vmatmul.mubr.f32.gmra.mxu0 %v61
    %v138 = vpop.f32.mrf.mxu0
    %v139 = vadd.f32 %v42, %v138
    %v140 = vpop.f32.mrf.mxu0
    %141 = vmatprep.mubr.f32.mxu0 0.0
    %142 = vmatmul.mubr.f32.gmra.mxu0 %v64
    %v143 = vpop.f32.mrf.mxu0
    %v144 = vadd.f32 %v47, %v143
    %v145 = vpop.f32.mrf.mxu0
    %146 = vmatprep.mubr.f32.mxu0 0.0
    %147 = vmatmul.mubr.f32.gmra.mxu0 %v67
    %v148 = vpop.f32.mrf.mxu0
    %v149 = vadd.f32 %v52, %v148
    %v150 = vpop.f32.mrf.mxu0
    %151 = vmatprep.mubr.f32.mxu0 0.0
    %152 = vmatmul.mubr.f32.gmra.mxu0 %v70
    %v153 = vpop.f32.mrf.mxu0
    %v154 = vadd.f32 %v57, %v153
    %v155 = vpop.f32.mrf.mxu0
    %156 = vdwg.mxu0
    %v157 = vadd.f32 %v139, %v144
    %v158 = vadd.f32 %v157, %v149
    %v159 = vadd.f32 %v158, %v154
    %v160 = vrot.slane %v159, 4
    %v161 = vadd.f32 %v159, %v160
    %v162 = vrot.slane %v161, 2
    %v163 = vadd.f32 %v161, %v162
    %v164 = vrot.slane %v163, 1
    %v165 = vadd.f32 %v163, %v164
    %v166 = vrcp.pop 32.0
    %v167 = vmul.f32 %v165, %v166
    %v168 = vsub.f32 %v139, %v167
    %v169 = vsub.f32 %v144, %v167
    %v170 = vsub.f32 %v149, %v167
    %v171 = vsub.f32 %v154, %v167
    %v172 = vmul.f32 %v168, %v168
    %v173 = vmul.f32 %v169, %v169
    %v174 = vmul.f32 %v170, %v170
    %v175 = vmul.f32 %v171, %v171
    %v176 = vadd.f32 %v172, %v173
    %v177 = vadd.f32 %v176, %v174
    %v178 = vadd.f32 %v177, %v175
    %v179 = vrot.slane %v178, 4
    %v180 = vadd.f32 %v178, %v179
    %v181 = vrot.slane %v180, 2
    %v182 = vadd.f32 %v180, %v181
    %v183 = vrot.slane %v182, 1
    %v184 = vadd.f32 %v182, %v183
    %v185 = vmul.f32 %v184, %v166
    %v186 = vadd.f32 %v185, 1e-05
    %v187 = vrsqrt.pop %v186
    %v188 = vmul.f32 %v168, %v187
    %v189 = vmul.f32 %v169, %v187
    %v190 = vmul.f32 %v170, %v187
    %v191 = vmul.f32 %v171, %v187
    %192 = vset.pattern.permute.xlu0 1
    %193 = vperm.xlu0 %192, %v35
    %v194 = vpop.permute.xlu0 %193
    %196 = vset.pattern.permute.xlu0 1
    %197 = vperm.xlu0 %196, %v36
    %v198 = vpop.permute.xlu0 %197
    %200 = vset.pattern.permute.xlu0 1
    %201 = vperm.xlu0 %200, %v37
    %v202 = vpop.permute.xlu0 %201
    %204 = vset.pattern.permute.xlu0 1
    %205 = vperm.xlu0 %204, %v38
    %v206 = vpop.permute.xlu0 %205
    %v208 = vmul.f32 %v188, %v194
    %v209 = vmul.f32 %v189, %v198
    %v210 = vmul.f32 %v190, %v202
    %v211 = vmul.f32 %v191, %v206
    %212 = vset.pattern.permute.xlu0 2
    %213 = vperm.xlu0 %212, %v35
    %v214 = vpop.permute.xlu0 %213
    %216 = vset.pattern.permute.xlu0 2
    %217 = vperm.xlu0 %216, %v36
    %v218 = vpop.permute.xlu0 %217
    %220 = vset.pattern.permute.xlu0 2
    %221 = vperm.xlu0 %220, %v37
    %v222 = vpop.permute.xlu0 %221
    %224 = vset.pattern.permute.xlu0 2
    %225 = vperm.xlu0 %224, %v38
    %v226 = vpop.permute.xlu0 %225
    %v228 = vadd.f32 %v208, %v214
    %v229 = vadd.f32 %v209, %v218
    %v230 = vadd.f32 %v210, %v222
    %v231 = vadd.f32 %v211, %v226
    %v232 = vmax.f32 %v228, 0.0
    %v233 = vmax.f32 %v229, 0.0
    %v234 = vmax.f32 %v230, 0.0
    %v235 = vmax.f32 %v231, 0.0
    %v236 = vld [vmem:[%s3] sm:$0xff]
    %v237 = vld [vmem:[%s3 + $0x8] sm:$0xff]
    %v238 = vld [vmem:[%s3 + $0x10] sm:$0xff]
    %v239 = vld [vmem:[%s3 + $0x18] sm:$0xff]
    %v240 = vld [vmem:[%s4] sm:$0xff]
    %v241 = vld [vmem:[%s4 + $0x8] sm:$0xff]
    %v242 = vld [vmem:[%s4 + $0x10] sm:$0xff]
    %v243 = vld [vmem:[%s4 + $0x18] sm:$0xff]
    %v245 = vsel %vm59, %v240, 0
    %v248 = vsel %vm59, %v241, 0
    %v251 = vsel %vm59, %v242, 0
    %v254 = vsel %vm59, %v243, 0
    %256 = vmatprep.subr.mxu0 0.0
    %257 = vmatpush1.msra.mxu0 0.0
    %258 = vmatprep.subr.mxu0 0.0
    %259 = vmatpush1.msra.mxu0 0.0
    %260 = vmatprep.subr.mxu0 0.0
    %261 = vmatpush1.msra.mxu0 0.0
    %262 = vmatprep.subr.mxu0 0.0
    %263 = vmatpush1.msra.mxu0 0.0
    %264 = vmatprep.subr.mxu0 0.0
    %265 = vmatpush1.msra.mxu0 0.0
    %266 = vmatprep.subr.mxu0 0.0
    %267 = vmatpush1.msra.mxu0 0.0
    %268 = vmatprep.subr.mxu0 0.0
    %269 = vmatpush1.msra.mxu0 0.0
    %270 = vmatprep.subr.mxu0 0.0
    %271 = vmatpush1.msra.mxu0 0.0
    %272 = vmatprep.subr.mxu0 0.0
    %273 = vmatpush1.msra.mxu0 0.0
    %274 = vmatprep.subr.mxu0 0.0
    %275 = vmatpush1.msra.mxu0 0.0
    %276 = vmatprep.subr.mxu0 0.0
    %277 = vmatpush1.msra.mxu0 0.0
    %278 = vmatprep.subr.mxu0 0.0
    %279 = vmatpush1.msra.mxu0 0.0
    %280 = vmatprep.subr.mxu0 0.0
    %281 = vmatpush1.msra.mxu0 0.0
    %282 = vmatprep.subr.mxu0 0.0
    %283 = vmatpush1.msra.mxu0 %v30
    %284 = vmatprep.subr.mxu0 0.0
    %285 = vmatpush1.msra.mxu0 %v29
    %286 = vmatprep.subr.mxu0 0.0
    %287 = vmatpush1.msra.mxu0 %v28
    %288 = vmatprep.subr.mxu0 0.0
    %289 = vmatpush2.msra.mxu0 0.0
    %290 = vmatprep.subr.mxu0 0.0
    %291 = vmatpush2.msra.mxu0 0.0
    %292 = vmatprep.subr.mxu0 0.0
    %293 = vmatpush2.msra.mxu0 0.0
    %294 = vmatprep.subr.mxu0 0.0
    %295 = vmatpush2.msra.mxu0 0.0
    %296 = vmatprep.subr.mxu0 0.0
    %297 = vmatpush2.msra.mxu0 0.0
    %298 = vmatprep.subr.mxu0 0.0
    %299 = vmatpush2.msra.mxu0 0.0
    %300 = vmatprep.subr.mxu0 0.0
    %301 = vmatpush2.msra.mxu0 0.0
    %302 = vmatprep.subr.mxu0 0.0
    %303 = vmatpush2.msra.mxu0 0.0
    %304 = vmatprep.subr.mxu0 0.0
    %305 = vmatpush2.msra.mxu0 0.0
    %306 = vmatprep.subr.mxu0 0.0
    %307 = vmatpush2.msra.mxu0 0.0
    %308 = vmatprep.subr.mxu0 0.0
    %309 = vmatpush2.msra.mxu0 0.0
    %310 = vmatprep.subr.mxu0 0.0
    %311 = vmatpush2.msra.mxu0 0.0
    %312 = vmatprep.subr.mxu0 0.0
    %313 = vmatpush2.msra.mxu0 0.0
    %314 = vmatprep.subr.mxu0 0.0
    %315 = vmatpush2.msra.mxu0 0.0
    %316 = vmatprep.subr.mxu0 0.0
    %317 = vmatpush2.msra.mxu0 0.0
    %318 = vmatprep.subr.mxu0 0.0
    %319 = vmatpush2.msra.mxu0 0.0
    %320 = vmatprep.mubr.f32.mxu0 0.0
    %321 = vmatmul.mubr.f32.gmra.mxu0 %v245
    %v322 = vpop.f32.mrf.mxu0
    %v323 = vadd.f32 0.0, %v322
    %v324 = vpop.f32.mrf.mxu0
    %325 = vmatprep.mubr.f32.mxu0 0.0
    %326 = vmatmul.mubr.f32.gmra.mxu0 %v248
    %v327 = vpop.f32.mrf.mxu0
    %v328 = vadd.f32 0.0, %v327
    %v329 = vpop.f32.mrf.mxu0
    %330 = vmatprep.mubr.f32.mxu0 0.0
    %331 = vmatmul.mubr.f32.gmra.mxu0 %v251
    %v332 = vpop.f32.mrf.mxu0
    %v333 = vadd.f32 0.0, %v332
    %v334 = vpop.f32.mrf.mxu0
    %335 = vmatprep.mubr.f32.mxu0 0.0
    %336 = vmatmul.mubr.f32.gmra.mxu0 %v254
    %v337 = vpop.f32.mrf.mxu0
    %v338 = vadd.f32 0.0, %v337
    %v339 = vpop.f32.mrf.mxu0
    %340 = vdwg.mxu0
    %vm341 = vcmask 261120
    %v343 = vsel %vm341, %v236, 0
    %v346 = vsel %vm341, %v237, 0
    %v349 = vsel %vm341, %v238, 0
    %v352 = vsel %vm341, %v239, 0
    %354 = vmatprep.subr.mxu0 0.0
    %355 = vmatpush1.msra.mxu0 0.0
    %356 = vmatprep.subr.mxu0 0.0
    %357 = vmatpush1.msra.mxu0 0.0
    %358 = vmatprep.subr.mxu0 0.0
    %359 = vmatpush1.msra.mxu0 0.0
    %360 = vmatprep.subr.mxu0 0.0
    %361 = vmatpush1.msra.mxu0 0.0
    %362 = vmatprep.subr.mxu0 0.0
    %363 = vmatpush1.msra.mxu0 0.0
    %364 = vmatprep.subr.mxu0 0.0
    %365 = vmatpush1.msra.mxu0 0.0
    %366 = vmatprep.subr.mxu0 0.0
    %367 = vmatpush1.msra.mxu0 0.0
    %368 = vmatprep.subr.mxu0 0.0
    %369 = vmatpush1.msra.mxu0 0.0
    %370 = vmatprep.subr.mxu0 0.0
    %371 = vmatpush1.msra.mxu0 0.0
    %372 = vmatprep.subr.mxu0 0.0
    %373 = vmatpush1.msra.mxu0 0.0
    %374 = vmatprep.subr.mxu0 0.0
    %375 = vmatpush1.msra.mxu0 0.0
    %376 = vmatprep.subr.mxu0 0.0
    %377 = vmatpush1.msra.mxu0 0.0
    %378 = vmatprep.subr.mxu0 0.0
    %379 = vmatpush1.msra.mxu0 %v235
    %380 = vmatprep.subr.mxu0 0.0
    %381 = vmatpush1.msra.mxu0 %v234
    %382 = vmatprep.subr.mxu0 0.0
    %383 = vmatpush1.msra.mxu0 %v233
    %384 = vmatprep.subr.mxu0 0.0
    %385 = vmatpush1.msra.mxu0 %v232
    %386 = vmatprep.subr.mxu0 0.0
    %387 = vmatpush2.msra.mxu0 0.0
    %388 = vmatprep.subr.mxu0 0.0
    %389 = vmatpush2.msra.mxu0 0.0
    %390 = vmatprep.subr.mxu0 0.0
    %391 = vmatpush2.msra.mxu0 0.0
    %392 = vmatprep.subr.mxu0 0.0
    %393 = vmatpush2.msra.mxu0 0.0
    %394 = vmatprep.subr.mxu0 0.0
    %395 = vmatpush2.msra.mxu0 0.0
    %396 = vmatprep.subr.mxu0 0.0
    %397 = vmatpush2.msra.mxu0 0.0
    %398 = vmatprep.subr.mxu0 0.0
    %399 = vmatpush2.msra.mxu0 0.0
    %400 = vmatprep.subr.mxu0 0.0
    %401 = vmatpush2.msra.mxu0 0.0
    %402 = vmatprep.subr.mxu0 0.0
    %403 = vmatpush2.msra.mxu0 0.0
    %404 = vmatprep.subr.mxu0 0.0
    %405 = vmatpush2.msra.mxu0 0.0
    %406 = vmatprep.subr.mxu0 0.0
    %407 = vmatpush2.msra.mxu0 0.0
    %408 = vmatprep.subr.mxu0 0.0
    %409 = vmatpush2.msra.mxu0 0.0
    %410 = vmatprep.subr.mxu0 0.0
    %411 = vmatpush2.msra.mxu0 0.0
    %412 = vmatprep.subr.mxu0 0.0
    %413 = vmatpush2.msra.mxu0 0.0
    %414 = vmatprep.subr.mxu0 0.0
    %415 = vmatpush2.msra.mxu0 0.0
    %416 = vmatprep.subr.mxu0 0.0
    %417 = vmatpush2.msra.mxu0 0.0
    %418 = vmatprep.mubr.f32.mxu0 0.0
    %419 = vmatmul.mubr.f32.gmra.mxu0 %v343
    %v420 = vpop.f32.mrf.mxu0
    %v421 = vadd.f32 %v323, %v420
    %v422 = vpop.f32.mrf.mxu0
    %423 = vmatprep.mubr.f32.mxu0 0.0
    %424 = vmatmul.mubr.f32.gmra.mxu0 %v346
    %v425 = vpop.f32.mrf.mxu0
    %v426 = vadd.f32 %v328, %v425
    %v427 = vpop.f32.mrf.mxu0
    %428 = vmatprep.mubr.f32.mxu0 0.0
    %429 = vmatmul.mubr.f32.gmra.mxu0 %v349
    %v430 = vpop.f32.mrf.mxu0
    %v431 = vadd.f32 %v333, %v430
    %v432 = vpop.f32.mrf.mxu0
    %433 = vmatprep.mubr.f32.mxu0 0.0
    %434 = vmatmul.mubr.f32.gmra.mxu0 %v352
    %v435 = vpop.f32.mrf.mxu0
    %v436 = vadd.f32 %v338, %v435
    %v437 = vpop.f32.mrf.mxu0
    %438 = vdwg.mxu0
    %v439 = vld [vmem:[%s5] sm:$0xff]
    %v440 = vld [vmem:[%s5 + $0x8] sm:$0xff]
    %v441 = vld [vmem:[%s5 + $0x10] sm:$0xff]
    %v442 = vld [vmem:[%s5 + $0x18] sm:$0xff]
    %444 = vset.pattern.permute.xlu0 0
    %445 = vperm.xlu0 %444, %v439
    %v446 = vpop.permute.xlu0 %445
    %449 = vset.pattern.permute.xlu0 0
    %450 = vperm.xlu0 %449, %v440
    %v451 = vpop.permute.xlu0 %450
    %454 = vset.pattern.permute.xlu0 0
    %455 = vperm.xlu0 %454, %v441
    %v456 = vpop.permute.xlu0 %455
    %459 = vset.pattern.permute.xlu0 0
    %460 = vperm.xlu0 %459, %v442
    %v461 = vpop.permute.xlu0 %460
    %v463 = vadd.f32 %v421, %v446
    %v464 = vadd.f32 %v426, %v451
    %v465 = vadd.f32 %v431, %v456
    %v466 = vadd.f32 %v436, %v461
    %v467 = vadd.f32 %v463, %v464
    %v468 = vadd.f32 %v467, %v465
    %v469 = vadd.f32 %v468, %v466
    %v470 = vrot.slane %v469, 4
    %v471 = vadd.f32 %v469, %v470
    %v472 = vrot.slane %v471, 2
    %v473 = vadd.f32 %v471, %v472
    %v474 = vrot.slane %v473, 1
    %v475 = vadd.f32 %v473, %v474
    %v476 = vmul.f32 %v475, %v166
    %v477 = vsub.f32 %v463, %v476
    %v478 = vsub.f32 %v464, %v476
    %v479 = vsub.f32 %v465, %v476
    %v480 = vsub.f32 %v466, %v476
    %v481 = vmul.f32 %v477, %v477
    %v482 = vmul.f32 %v478, %v478
    %v483 = vmul.f32 %v479, %v479
    %v484 = vmul.f32 %v480, %v480
    %v485 = vadd.f32 %v481, %v482
    %v486 = vadd.f32 %v485, %v483
    %v487 = vadd.f32 %v486, %v484
    %v488 = vrot.slane %v487, 4
    %v489 = vadd.f32 %v487, %v488
    %v490 = vrot.slane %v489, 2
    %v491 = vadd.f32 %v489, %v490
    %v492 = vrot.slane %v491, 1
    %v493 = vadd.f32 %v491, %v492
    %v494 = vmul.f32 %v493, %v166
    %v495 = vadd.f32 %v494, 1e-05
    %v496 = vrsqrt.pop %v495
    %v497 = vmul.f32 %v477, %v496
    %v498 = vmul.f32 %v478, %v496
    %v499 = vmul.f32 %v479, %v496
    %v500 = vmul.f32 %v480, %v496
    %501 = vset.pattern.permute.xlu0 1
    %502 = vperm.xlu0 %501, %v439
    %v503 = vpop.permute.xlu0 %502
    %505 = vset.pattern.permute.xlu0 1
    %506 = vperm.xlu0 %505, %v440
    %v507 = vpop.permute.xlu0 %506
    %509 = vset.pattern.permute.xlu0 1
    %510 = vperm.xlu0 %509, %v441
    %v511 = vpop.permute.xlu0 %510
    %513 = vset.pattern.permute.xlu0 1
    %514 = vperm.xlu0 %513, %v442
    %v515 = vpop.permute.xlu0 %514
    %v517 = vmul.f32 %v497, %v503
    %v518 = vmul.f32 %v498, %v507
    %v519 = vmul.f32 %v499, %v511
    %v520 = vmul.f32 %v500, %v515
    %521 = vset.pattern.permute.xlu0 2
    %522 = vperm.xlu0 %521, %v439
    %v523 = vpop.permute.xlu0 %522
    %525 = vset.pattern.permute.xlu0 2
    %526 = vperm.xlu0 %525, %v440
    %v527 = vpop.permute.xlu0 %526
    %529 = vset.pattern.permute.xlu0 2
    %530 = vperm.xlu0 %529, %v441
    %v531 = vpop.permute.xlu0 %530
    %533 = vset.pattern.permute.xlu0 2
    %534 = vperm.xlu0 %533, %v442
    %v535 = vpop.permute.xlu0 %534
    %v537 = vadd.f32 %v517, %v523
    %v538 = vadd.f32 %v518, %v527
    %v539 = vadd.f32 %v519, %v531
    %v540 = vadd.f32 %v520, %v535
    %v541 = vmax.f32 %v537, 0.0
    %v542 = vmax.f32 %v538, 0.0
    %v543 = vmax.f32 %v539, 0.0
    %v544 = vmax.f32 %v540, 0.0
    %545 = vset.pattern.permute.xlu0 3
    %546 = vperm.xlu0 %545, %v439
    %v547 = vpop.permute.xlu0 %546
    %549 = vset.pattern.permute.xlu0 3
    %550 = vperm.xlu0 %549, %v440
    %v551 = vpop.permute.xlu0 %550
    %553 = vset.pattern.permute.xlu0 3
    %554 = vperm.xlu0 %553, %v441
    %v555 = vpop.permute.xlu0 %554
    %557 = vset.pattern.permute.xlu0 3
    %558 = vperm.xlu0 %557, %v442
    %v559 = vpop.permute.xlu0 %558
    %v561 = vmul.f32 %v541, %v547
    %v562 = vmul.f32 %v542, %v551
    %v563 = vmul.f32 %v543, %v555
    %v564 = vmul.f32 %v544, %v559
    %v565 = vadd.f32 %v561, %v562
    %v566 = vadd.f32 %v565, %v563
    %v567 = vadd.f32 %v566, %v564
    %v568 = vrot.slane %v567, 4
    %v569 = vadd.f32 %v567, %v568
    %v570 = vrot.slane %v569, 2
    %v571 = vadd.f32 %v569, %v570
    %v572 = vrot.slane %v571, 1
    %v573 = vadd.f32 %v571, %v572
    %s574 = sld [smem:[#allocation2]]
    %v575 = vstv %s574
    %v576 = vadd.f32 %v573, %v575
    %577 = vst [vmem:[#allocation3] sm:$0x1] %v576
    // Predicated region
    $region30: #{tpu_custom_call.1} parent=1 // pred_check
      _
    $region31: #{tpu_custom_call.1} parent=1 // pred_check_branch
      %579 = sbr.rel (0) target = $region33
    $region32: #{tpu_custom_call.1} parent=1 // pred_region
      %s581 = ssub.s32 16, 16
      %582 = vsyncadd [#allocation4], %s581
      %s584 = sshll.u32 [#allocation3], 4
      %s585 = int_to_ptr.vmem [resolvable:$true] %s584
      %587 = dma.vmem_to_hbm [thread:$0]  %s585, 16, %s7, [#allocation4]
    $region33: #{tpu_custom_call.1} parent=1 // pred_fallthru
      _
    // Predicated region
    $region34: #{tpu_custom_call.1} parent=1 // pred_check
      _
    $region35: #{tpu_custom_call.1} parent=1 // pred_check_branch
      %589 = sbr.rel (0) target = $region37
    $region36: #{tpu_custom_call.1} parent=1 // pred_region
      %590 = dma.done [#allocation4], 16
    $region37: #{tpu_custom_call.1} parent=1 // pred_fallthru
      _
    %591 = vsyncpa [#allocation4], 1

</llo_original>
